<compile_context>
chip_gen: v5e
topology: v5e:2x2
jax: 0.10.0
libtpu: 0.0.40
codegen_flags: <defaults>
</compile_context>

<pallas_src>
import jax
import jax.numpy as jnp
from jax.experimental import pallas as pl
from jax.experimental.pallas import tpu as pltpu


def _round_up(n: int, m: int) -> int:
    return (n + m - 1) // m * m


# ----------------------------------------------------------------------------
# Kernels
# ----------------------------------------------------------------------------
def _mlp_kernel_resident(x_ref, w1_ref, b1_ref, w2_ref, b2_ref, o_ref):
    """Weights fully VMEM-resident; one grid axis over batch tiles."""
    # linear1 (BN folded into w1/b1): bf16 MXU matmul, f32 accumulate.
    h = jnp.dot(x_ref[...], w1_ref[...], preferred_element_type=jnp.float32)
    h = h + b1_ref[...]                                    # [tm, Kp] f32
    # LeakyReLU (negative_slope = 0.01): mul + max (2 VPU ops).
    h = jnp.maximum(h, jnp.float32(0.01) * h)
    # drop1: identity in eval mode.
    # linear2: bf16 MXU matmul, f32 accumulate.
    y = jnp.dot(h.astype(w2_ref.dtype), w2_ref[...],
                preferred_element_type=jnp.float32)
    o_ref[...] = (y + b2_ref[...]).astype(o_ref.dtype)     # [tm, Np]


def _mlp_kernel_stream(x_ref, w1_ref, b1_ref, w2_ref, b2_ref, o_ref, acc_ref):
    """Weights streamed over the hidden axis (K-tiled); accumulate in VMEM.

    Grid = (batch_tiles, K_tiles); K is last and "arbitrary".
    Per K step:  h_blk = LeakyReLU(x @ W1[:, kblk] + b1[kblk])   # [tm, tk]
                 acc  += h_blk @ W2[kblk, :]                     # [tm, Np]
    """
    k = pl.program_id(1)

    @pl.when(k == 0)
    def _():
        acc_ref[...] = jnp.zeros_like(acc_ref)

    h = jnp.dot(x_ref[...], w1_ref[...], preferred_element_type=jnp.float32)
    h = h + b1_ref[...]                                    # [tm, tk] f32
    h = jnp.maximum(h, jnp.float32(0.01) * h)
    acc_ref[...] += jnp.dot(h.astype(w2_ref.dtype), w2_ref[...],
                            preferred_element_type=jnp.float32)

    @pl.when(k == pl.num_programs(1) - 1)
    def _():
        o_ref[...] = (acc_ref[...] + b2_ref[...]).astype(o_ref.dtype)


# ----------------------------------------------------------------------------
# Parameter prep
# ----------------------------------------------------------------------------
def init_params(key, in_dim, out_dim):
    """Raw PyTorch-layout parameters for ProjectionMLP (eval mode).

    linear1: weight [in_dim, in_dim], bias [in_dim]
    bn1:     gamma/beta/running_mean/running_var [in_dim]
    linear2: weight [out_dim, in_dim], bias [out_dim]
    (hidden_dim is unused by the PyTorch module.)
    """
    ks = jax.random.split(key, 8)
    bound1 = 1.0 / jnp.sqrt(in_dim)
    return {
        "w1": jax.random.uniform(ks[0], (in_dim, in_dim), jnp.float32, -bound1, bound1),
        "b1": jax.random.uniform(ks[1], (in_dim,), jnp.float32, -bound1, bound1),
        # Non-trivial BN stats so the constant fold is actually exercised.
        "gamma": jax.random.uniform(ks[2], (in_dim,), jnp.float32, 0.5, 1.5),
        "beta": jax.random.uniform(ks[3], (in_dim,), jnp.float32, -0.5, 0.5),
        "running_mean": jax.random.uniform(ks[4], (in_dim,), jnp.float32, -0.5, 0.5),
        "running_var": jax.random.uniform(ks[5], (in_dim,), jnp.float32, 0.5, 1.5),
        "w2": jax.random.uniform(ks[6], (out_dim, in_dim), jnp.float32, -bound1, bound1),
        "b2": jax.random.uniform(ks[7], (out_dim,), jnp.float32, -bound1, bound1),
    }


def prepare_params(raw, eps=1e-5):
    """One-time constant fold + layout prep (BN -> linear1, transpose, pad, bf16).

    Pads feature / output dims to multiples of 256 so the 256x256 MXUs on
    v6e/v7x see full tiles (also a valid 128-multiple for v5e).
    """
    in_dim = raw["w1"].shape[0]
    out_dim = raw["w2"].shape[0]
    Kp = _round_up(in_dim, 256)   # hidden / lane axis
    Np = _round_up(out_dim, 256)  # output lane axis

    # Fold BatchNorm1d (inference) into linear1:
    #   scale = gamma / sqrt(var + eps)
    #   W1_fold[:, j] = W1^T[:, j] * scale[j]
    #   b1_fold       = (b1 - mean) * scale + beta
    scale = raw["gamma"] * jax.lax.rsqrt(raw["running_var"] + jnp.float32(eps))
    w1_fold = raw["w1"].T * scale[None, :]                       # [in_dim, in_dim]
    b1_fold = (raw["b1"] - raw["running_mean"]) * scale + raw["beta"]
    w2_t = raw["w2"].T                                           # [in_dim, out_dim]

    def pad2(a, rows, cols):
        return jnp.pad(a, ((0, rows - a.shape[0]), (0, cols - a.shape[1])))

    return {
        "w1": pad2(w1_fold, Kp, Kp).astype(jnp.bfloat16),        # [Kp, Kp] bf16
        "b1": pad2(b1_fold.reshape(1, -1), 1, Kp),               # [1, Kp]  f32
        "w2": pad2(w2_t, Kp, Np).astype(jnp.bfloat16),           # [Kp, Np] bf16
        "b2": pad2(raw["b2"].reshape(1, -1), 1, Np),             # [1, Np]  f32
        "in_dim": in_dim,
        "out_dim": out_dim,
        "Kp": Kp,
        "Np": Np,
    }


# ----------------------------------------------------------------------------
# Forward wrapper
# ----------------------------------------------------------------------------
def _vmem_limit_bytes() -> int:
    """Per-generation scoped-VMEM limit with headroom."""
    try:
        cap = int(pltpu.get_tpu_info().vmem_capacity_bytes)
    except Exception:
        cap = 64 * 1024 * 1024          # be conservative (v7x-sized) if unknown
    if cap >= 100 * 1024 * 1024:        # v5e / v6e: 128 MiB physical
        return 100 * 1024 * 1024
    return 48 * 1024 * 1024             # v7x: 64 MiB physical


def _choose_tile_m(B: int, max_tile_m: int) -> int:
    """Row tile: minimize padding, prefer >=2 tiles (v7x megacore), mult of 16."""
    n_tiles = max(-(-B // max_tile_m), 1)
    if n_tiles == 1 and B > 16:
        n_tiles = 2                      # keep both v7x TensorCores busy
    return _round_up(-(-B // n_tiles), 16)


def projection_mlp_forward(x, p, *, max_tile_m=256, tile_k=256,
                           force_stream=False, out_dtype=jnp.float32):
    """x: [B, in_dim] float32. p: output of prepare_params()."""
    B, in_dim = x.shape
    assert in_dim == p["in_dim"]
    Kp, Np = p["Kp"], p["Np"]

    tm = _choose_tile_m(B, max_tile_m)
    Bp = _round_up(B, tm)

    # Pad only when needed (skip the extra HBM pass in the aligned case).
    if Bp != B or Kp != in_dim:
        x = jnp.pad(x, ((0, Bp - B), (0, Kp - in_dim)))
    x_p = x.astype(jnp.bfloat16)

    vmem_limit = _vmem_limit_bytes()
    # Single-buffered weights + double-buffered x / out tiles.
    resident_bytes = ((Kp * Kp + Kp * Np) * 2 + (Kp + Np) * 4
                      + 2 * tm * Kp * 2
                      + 2 * tm * Np * jnp.dtype(out_dtype).itemsize)
    use_stream = force_stream or resident_bytes > int(0.85 * vmem_limit)

    if not use_stream:
        # ------------------------- resident-weight path ----------------------
        out_padded = pl.pallas_call(
            _mlp_kernel_resident,
            out_shape=jax.ShapeDtypeStruct((Bp, Np), out_dtype),
            grid=(Bp // tm,),
            in_specs=[
                pl.BlockSpec((tm, Kp), lambda i: (i, 0)),        # x tile (pipelined)
                pl.BlockSpec((Kp, Kp), lambda i: (0, 0),
                             pipeline_mode=pl.Buffered(1)),      # W1 (folded), resident
                pl.BlockSpec((1, Kp), lambda i: (0, 0),
                             pipeline_mode=pl.Buffered(1)),      # b1 (folded)
                pl.BlockSpec((Kp, Np), lambda i: (0, 0),
                             pipeline_mode=pl.Buffered(1)),      # W2, resident
                pl.BlockSpec((1, Np), lambda i: (0, 0),
                             pipeline_mode=pl.Buffered(1)),      # b2
            ],
            out_specs=pl.BlockSpec((tm, Np), lambda i: (i, 0)),
            compiler_params=pltpu.CompilerParams(
                dimension_semantics=("parallel",),               # batch tiles -> TCs
                vmem_limit_bytes=vmem_limit,
            ),
        )(x_p, p["w1"], p["b1"], p["w2"], p["b2"])
    else:
        # ---------------------- K-tiled streaming path -----------------------
        tk = min(int(tile_k), Kp)
        if Kp % tk != 0:
            tk = 256                      # Kp is always a multiple of 256
        out_padded = pl.pallas_call(
            _mlp_kernel_stream,
            out_shape=jax.ShapeDtypeStruct((Bp, Np), out_dtype),
            grid=(Bp // tm, Kp // tk),
            in_specs=[
                pl.BlockSpec((tm, Kp), lambda i, k: (i, 0)),     # x tile (held over k)
                pl.BlockSpec((Kp, tk), lambda i, k: (0, k)),     # W1 column block
                pl.BlockSpec((1, tk), lambda i, k: (0, k)),      # b1 block
                pl.BlockSpec((tk, Np), lambda i, k: (k, 0)),     # W2 row block
                pl.BlockSpec((1, Np), lambda i, k: (0, 0),
                             pipeline_mode=pl.Buffered(1)),      # b2
            ],
            out_specs=pl.BlockSpec((tm, Np), lambda i, k: (i, 0)),
            scratch_shapes=[pltpu.VMEM((tm, Np), jnp.float32)],
            compiler_params=pltpu.CompilerParams(
                dimension_semantics=("parallel", "arbitrary"),
                vmem_limit_bytes=vmem_limit,
            ),
        )(x_p, p["w1"], p["b1"], p["w2"], p["b2"])

    return out_padded[:B, :p["out_dim"]]


# ----------------------------------------------------------------------------
# Reference + self-test
# ----------------------------------------------------------------------------
def _reference(x, raw, eps=1e-5):
    """Plain-JAX f32 reference of the eval-mode PyTorch module."""
    h = x @ raw["w1"].T + raw["b1"]
    h = (h - raw["running_mean"]) * (raw["gamma"] / jnp.sqrt(raw["running_var"] + eps)) + raw["beta"]
    h = jnp.where(h >= 0, h, 0.01 * h)
    return h @ raw["w2"].T + raw["b2"]


def _run_case(key, B, in_dim, out_dim, **fwd_kwargs):
    k_x, k_p = jax.random.split(key)
    x = jax.random.normal(k_x, (B, in_dim), jnp.float32)
    raw = init_params(k_p, in_dim, out_dim)
    params = prepare_params(raw)
    y = jax.block_until_ready(projection_mlp_forward(x, params, **fwd_kwargs))
    y_ref = _reference(x, raw)
    assert y.shape == (B, out_dim), (y.shape, (B, out_dim))
    # bf16 matmul operands with f32 accumulation -> loosened tolerance.
    err = jnp.max(jnp.abs(y - y_ref))
    assert jnp.allclose(y, y_ref, atol=5e-2, rtol=5e-2), f"max abs err {err}"
    return y


if __name__ == "__main__":
    root = jax.random.PRNGKey(0)
    k1, k2, k3 = jax.random.split(root, 3)

    # 1) Small shapes (module-sized), resident-weight path, single batch tile.
    _run_case(k1, B=8, in_dim=32, out_dim=16)

    # 2) Ragged batch + ragged features: multi-tile batch path, padding/slicing.
    _run_case(k2, B=300, in_dim=160, out_dim=48)

    # 3) K-tiled streaming path forced on (2 batch tiles x 2 K steps).
    _run_case(k3, B=64, in_dim=300, out_dim=100, force_stream=True, tile_k=256)

    print("KERNEL_OK")
</pallas_src>

<mosaic_0001>
module attributes {stable_mosaic.version = 11 : i64} {
  func.func @_mlp_kernel_resident(%arg0: i32, %arg1: memref<16x256xbf16, #tpu.memory_space<vmem>>, %arg2: memref<256x256xbf16, #tpu.memory_space<vmem>>, %arg3: memref<1x256xf32, #tpu.memory_space<vmem>>, %arg4: memref<256x256xbf16, #tpu.memory_space<vmem>>, %arg5: memref<1x256xf32, #tpu.memory_space<vmem>>, %arg6: memref<16x256xf32, #tpu.memory_space<vmem>>) attributes {dimension_semantics = [#tpu.dimension_semantics<parallel>], iteration_bounds = array<i64: 1>, scalar_prefetch = 0 : i64, scratch_operands = 0 : i64, tpu.core_type = #tpu.core_type<tc>, window_params = [{transform_indices = @transform_0, window_bounds = array<i64: 16, 256>}, {pipeline_mode = #tpu.pipeline_mode<synchronous>, transform_indices = @transform_1, window_bounds = array<i64: 256, 256>}, {pipeline_mode = #tpu.pipeline_mode<synchronous>, transform_indices = @transform_2, window_bounds = array<i64: 1, 256>}, {pipeline_mode = #tpu.pipeline_mode<synchronous>, transform_indices = @transform_3, window_bounds = array<i64: 256, 256>}, {pipeline_mode = #tpu.pipeline_mode<synchronous>, transform_indices = @transform_4, window_bounds = array<i64: 1, 256>}, {transform_indices = @transform_5, window_bounds = array<i64: 16, 256>}]} {
    %c0 = arith.constant 0 : index
    %c0_0 = arith.constant 0 : index
    %0 = vector.load %arg1[%c0, %c0_0] : memref<16x256xbf16, #tpu.memory_space<vmem>>, vector<16x256xbf16>
    %c0_1 = arith.constant 0 : index
    %c0_2 = arith.constant 0 : index
    %1 = vector.load %arg2[%c0_1, %c0_2] : memref<256x256xbf16, #tpu.memory_space<vmem>>, vector<256x256xbf16>
    %cst = arith.constant dense<0.000000e+00> : vector<16x256xf32>
    %2 = tpu.matmul %0, %1, %cst {dimension_numbers = #tpu.dot_dimension_numbers<[1], [0], [0], [1], [0, 0, 1, 1], [], []>} : vector<16x256xbf16>, vector<256x256xbf16>, vector<16x256xf32> -> vector<16x256xf32>
    %c0_3 = arith.constant 0 : index
    %c0_4 = arith.constant 0 : index
    %3 = vector.load %arg3[%c0_3, %c0_4] : memref<1x256xf32, #tpu.memory_space<vmem>>, vector<1x256xf32>
    %4 = vector.broadcast %3 : vector<1x256xf32> to vector<16x256xf32>
    %5 = arith.addf %2, %4 : vector<16x256xf32>
    %cst_5 = arith.constant 0.00999999977 : f32
    %6 = vector.broadcast %cst_5 : f32 to vector<16x256xf32>
    %7 = arith.mulf %6, %5 : vector<16x256xf32>
    %8 = arith.maximumf %5, %7 : vector<16x256xf32>
    %9 = arith.truncf %8 : vector<16x256xf32> to vector<16x256xbf16>
    %c0_6 = arith.constant 0 : index
    %c0_7 = arith.constant 0 : index
    %10 = vector.load %arg4[%c0_6, %c0_7] : memref<256x256xbf16, #tpu.memory_space<vmem>>, vector<256x256xbf16>
    %cst_8 = arith.constant dense<0.000000e+00> : vector<16x256xf32>
    %11 = tpu.matmul %9, %10, %cst_8 {dimension_numbers = #tpu.dot_dimension_numbers<[1], [0], [0], [1], [0, 0, 1, 1], [], []>} : vector<16x256xbf16>, vector<256x256xbf16>, vector<16x256xf32> -> vector<16x256xf32>
    %c0_9 = arith.constant 0 : index
    %c0_10 = arith.constant 0 : index
    %12 = vector.load %arg5[%c0_9, %c0_10] : memref<1x256xf32, #tpu.memory_space<vmem>>, vector<1x256xf32>
    %13 = vector.broadcast %12 : vector<1x256xf32> to vector<16x256xf32>
    %14 = arith.addf %11, %13 : vector<16x256xf32>
    %c0_11 = arith.constant 0 : index
    %c0_12 = arith.constant 0 : index
    %15 = vector.load %arg6[%c0_11, %c0_12] : memref<16x256xf32, #tpu.memory_space<vmem>>, vector<16x256xf32>
    tpu.vector_store %arg6[%c0_11, %c0_12], %14 {strides = array<i32>} : memref<16x256xf32, #tpu.memory_space<vmem>>, vector<16x256xf32>,
    return
  }
  func.func @transform_0(%arg0: i32) -> (i32, i32) {
    %c0_i32 = arith.constant 0 : i32
    %c0_i32_0 = arith.constant 0 : i32
    return %arg0, %c0_i32 : i32, i32
  }
  func.func @transform_1(%arg0: i32) -> (i32, i32) {
    %c0_i32 = arith.constant 0 : i32
    %c0_i32_0 = arith.constant 0 : i32
    %c0_i32_1 = arith.constant 0 : i32
    return %c0_i32, %c0_i32_0 : i32, i32
  }
  func.func @transform_2(%arg0: i32) -> (i32, i32) {
    %c0_i32 = arith.constant 0 : i32
    %c0_i32_0 = arith.constant 0 : i32
    %c0_i32_1 = arith.constant 0 : i32
    return %c0_i32, %c0_i32_0 : i32, i32
  }
  func.func @transform_3(%arg0: i32) -> (i32, i32) {
    %c0_i32 = arith.constant 0 : i32
    %c0_i32_0 = arith.constant 0 : i32
    %c0_i32_1 = arith.constant 0 : i32
    return %c0_i32, %c0_i32_0 : i32, i32
  }
  func.func @transform_4(%arg0: i32) -> (i32, i32) {
    %c0_i32 = arith.constant 0 : i32
    %c0_i32_0 = arith.constant 0 : i32
    %c0_i32_1 = arith.constant 0 : i32
    return %c0_i32, %c0_i32_0 : i32, i32
  }
  func.func @transform_5(%arg0: i32) -> (i32, i32) {
    %c0_i32 = arith.constant 0 : i32
    %c0_i32_0 = arith.constant 0 : i32
    return %arg0, %c0_i32 : i32, i32
  }
}

</mosaic_0001>

<llo_original>
// kernel: tpu_custom_call.1
$region0: #{tpu_custom_call.1}
  #allocation0 [shape = 'u32[]', space=smem, size = 0x4, offset = 0x4, fixed_abs, tag = 'smem constant byte address 0x4 - core index']
  #allocation1 [shape = 'u32[72,128]{1,0:T(1,128)}', space=vmem, size = 0x9000, scoped, tag = 'internal scratch']
  %s0 = inlined_call_operand.hbm [shape: bf16[16,256], index: 0, kind: input, shape index: {}]
  %s1 = inlined_call_operand.hbm [shape: bf16[256,256], index: 1, kind: input, shape index: {}]
  %s2 = inlined_call_operand.hbm [shape: f32[1,256], index: 2, kind: input, shape index: {}]
  %s3 = inlined_call_operand.hbm [shape: bf16[256,256], index: 3, kind: input, shape index: {}]
  %s4 = inlined_call_operand.vmem [shape: f32[1,256], index: 4, kind: input, shape index: {}]
  %s5 = inlined_call_operand.hbm [shape: f32[16,256], index: 5, kind: output, shape index: {}]
  %s6 = sld [smem:[#allocation0]]
  $region46: #{tpu_custom_call.1} parent=0
    _
  %s8 = ssub.s32 1, %s6
  %s9 = scalar_select 0, %s8, %s6
  $region1: #{tpu_custom_call.1} parent=0
    #allocation2 [shape = 'u8[8192]{0}', space=vmem, size = 0x2000, scoped, tag = 'input window, operand 0, single buffered']
    #allocation3 [shape = 's32[1]{0}', space=sflag, size = 0x4, scoped, tag = 'scoped memory for tpu_custom_call.1']
    #allocation4 [shape = 's32[1]{0}', space=sflag, size = 0x4, scoped, tag = 'scoped memory for tpu_custom_call.1']
    #allocation5 [shape = 'u8[131072]{0}', space=vmem, size = 0x20000, scoped, tag = 'input window, operand 1, single buffered']
    #allocation6 [shape = 's32[1]{0}', space=sflag, size = 0x4, scoped, tag = 'scoped memory for tpu_custom_call.1']
    #allocation7 [shape = 'u8[1024]{0}', space=vmem, size = 0x400, scoped, tag = 'input window, operand 2, single buffered']
    #allocation8 [shape = 'u8[131072]{0}', space=vmem, size = 0x20000, scoped, tag = 'input window, operand 3, single buffered']
    #allocation9 [shape = 's32[1]{0}', space=sflag, size = 0x4, scoped, tag = 'scoped memory for tpu_custom_call.1']
    #allocation10 [shape = 'u8[16384]{0}', space=vmem, size = 0x4000, scoped, tag = 'output window, operand 0, single buffered']
    %10 = vsyncpa [#allocation3], 0
    %11 = vsyncpa [#allocation6], 0
    %12 = vsyncpa [#allocation9], 0
    %13 = vsyncpa [#allocation4], 0
    // Predicated region
    $region2: #{tpu_custom_call.1} parent=1 // pred_check
      _
    $region3: #{tpu_custom_call.1} parent=1 // pred_check_branch
      %15 = sbr.rel (0) target = $region5
    $region4: #{tpu_custom_call.1} parent=1 // pred_region
      %17 = vsyncadd [#allocation3], 0
      %s18 = sshll.u32 %s0, 4
      %s19 = int_to_ptr.hbm [resolvable:$true] %s18
      %s20 = sshll.u32 [#allocation2], 4
      %s21 = int_to_ptr.vmem [resolvable:$true] %s20
      %26 = dma.hbm_to_vmem [thread:$0]  %s19, 256, %s21, [#allocation3], 128, 128, 8
    $region5: #{tpu_custom_call.1} parent=1 // pred_fallthru
      _
    // Predicated region
    $region6: #{tpu_custom_call.1} parent=1 // pred_check
      _
    $region7: #{tpu_custom_call.1} parent=1 // pred_check_branch
      %28 = sbr.rel (0) target = $region9
    $region8: #{tpu_custom_call.1} parent=1 // pred_region
      %30 = vsyncadd [#allocation6], 0
      %s31 = sshll.u32 %s1, 4
      %s32 = int_to_ptr.hbm [resolvable:$true] %s31
      %s33 = sshll.u32 [#allocation5], 4
      %s34 = int_to_ptr.vmem [resolvable:$true] %s33
      %39 = dma.hbm_to_vmem [thread:$0]  %s32, 4096, %s34, [#allocation6], 128, 128, 8
    $region9: #{tpu_custom_call.1} parent=1 // pred_fallthru
      _
    // Predicated region
    $region10: #{tpu_custom_call.1} parent=1 // pred_check
      _
    $region11: #{tpu_custom_call.1} parent=1 // pred_check_branch
      %41 = sbr.rel (0) target = $region13
    $region12: #{tpu_custom_call.1} parent=1 // pred_region
      %43 = vsyncadd [#allocation6], 0
      %s45 = sshll.u32 %s2, 4
      %s46 = int_to_ptr.hbm [resolvable:$true] %s45
      %s47 = sshll.u32 [#allocation7], 4
      %s48 = int_to_ptr.vmem [resolvable:$true] %s47
      %50 = dma.hbm_to_vmem [thread:$0]  %s46, 32, %s48, [#allocation6]
    $region13: #{tpu_custom_call.1} parent=1 // pred_fallthru
      _
    // Predicated region
    $region14: #{tpu_custom_call.1} parent=1 // pred_check
      _
    $region15: #{tpu_custom_call.1} parent=1 // pred_check_branch
      %52 = sbr.rel (0) target = $region17
    $region16: #{tpu_custom_call.1} parent=1 // pred_region
      %54 = vsyncadd [#allocation9], 0
      %s55 = sshll.u32 %s3, 4
      %s56 = int_to_ptr.hbm [resolvable:$true] %s55
      %s57 = sshll.u32 [#allocation8], 4
      %s58 = int_to_ptr.vmem [resolvable:$true] %s57
      %63 = dma.hbm_to_vmem [thread:$0]  %s56, 4096, %s58, [#allocation9], 128, 128, 8
    $region17: #{tpu_custom_call.1} parent=1 // pred_fallthru
      _
    // Predicated region
    $region18: #{tpu_custom_call.1} parent=1 // pred_check
      _
    $region19: #{tpu_custom_call.1} parent=1 // pred_check_branch
      %65 = sbr.rel (0) target = $region21
    $region20: #{tpu_custom_call.1} parent=1 // pred_region
      _
    $region21: #{tpu_custom_call.1} parent=1 // pred_fallthru
      _
    // Predicated region
    $region22: #{tpu_custom_call.1} parent=1 // pred_check
      _
    $region23: #{tpu_custom_call.1} parent=1 // pred_check_branch
      %67 = sbr.rel (0) target = $region25
    $region24: #{tpu_custom_call.1} parent=1 // pred_region
      %69 = dma.done [#allocation3], 256
    $region25: #{tpu_custom_call.1} parent=1 // pred_fallthru
      _
    // Predicated region
    $region26: #{tpu_custom_call.1} parent=1 // pred_check
      _
    $region27: #{tpu_custom_call.1} parent=1 // pred_check_branch
      %71 = sbr.rel (0) target = $region29
    $region28: #{tpu_custom_call.1} parent=1 // pred_region
      %73 = dma.done [#allocation6], 4096
    $region29: #{tpu_custom_call.1} parent=1 // pred_fallthru
      _
    // Predicated region
    $region30: #{tpu_custom_call.1} parent=1 // pred_check
      _
    $region31: #{tpu_custom_call.1} parent=1 // pred_check_branch
      %75 = sbr.rel (0) target = $region33
    $region32: #{tpu_custom_call.1} parent=1 // pred_region
      %77 = dma.done [#allocation6], 32
    $region33: #{tpu_custom_call.1} parent=1 // pred_fallthru
      _
    // Predicated region
    $region34: #{tpu_custom_call.1} parent=1 // pred_check
      _
    $region35: #{tpu_custom_call.1} parent=1 // pred_check_branch
      %79 = sbr.rel (0) target = $region37
    $region36: #{tpu_custom_call.1} parent=1 // pred_region
      %81 = dma.done [#allocation9], 4096
    $region37: #{tpu_custom_call.1} parent=1 // pred_fallthru
      _
    %v82 = vld [vmem:[#allocation2] sm:$0xff]
    %v83 = vld [vmem:[#allocation2 + $0x8] sm:$0xff]
    %v84 = vld [vmem:[#allocation5] sm:$0xff]
    %v85 = vld [vmem:[#allocation5 + $0x8] sm:$0xff]
    %v86 = vld [vmem:[#allocation5 + $0x10] sm:$0xff]
    %v87 = vld [vmem:[#allocation5 + $0x18] sm:$0xff]
    %v88 = vld [vmem:[#allocation5 + $0x20] sm:$0xff]
    %v89 = vld [vmem:[#allocation5 + $0x28] sm:$0xff]
    %v90 = vld [vmem:[#allocation5 + $0x30] sm:$0xff]
    %v91 = vld [vmem:[#allocation5 + $0x38] sm:$0xff]
    %v92 = vld [vmem:[#allocation5 + $0x40] sm:$0xff]
    %v93 = vld [vmem:[#allocation5 + $0x48] sm:$0xff]
    %v94 = vld [vmem:[#allocation5 + $0x50] sm:$0xff]
    %v95 = vld [vmem:[#allocation5 + $0x58] sm:$0xff]
    %v96 = vld [vmem:[#allocation5 + $0x60] sm:$0xff]
    %v97 = vld [vmem:[#allocation5 + $0x68] sm:$0xff]
    %v98 = vld [vmem:[#allocation5 + $0x70] sm:$0xff]
    %v99 = vld [vmem:[#allocation5 + $0x78] sm:$0xff]
    %v100 = vld [vmem:[#allocation5 + $0x80] sm:$0xff]
    %v101 = vld [vmem:[#allocation5 + $0x88] sm:$0xff]
    %v102 = vld [vmem:[#allocation5 + $0x90] sm:$0xff]
    %v103 = vld [vmem:[#allocation5 + $0x98] sm:$0xff]
    %v104 = vld [vmem:[#allocation5 + $0xa0] sm:$0xff]
    %v105 = vld [vmem:[#allocation5 + $0xa8] sm:$0xff]
    %v106 = vld [vmem:[#allocation5 + $0xb0] sm:$0xff]
    %v107 = vld [vmem:[#allocation5 + $0xb8] sm:$0xff]
    %v108 = vld [vmem:[#allocation5 + $0xc0] sm:$0xff]
    %v109 = vld [vmem:[#allocation5 + $0xc8] sm:$0xff]
    %v110 = vld [vmem:[#allocation5 + $0xd0] sm:$0xff]
    %v111 = vld [vmem:[#allocation5 + $0xd8] sm:$0xff]
    %v112 = vld [vmem:[#allocation5 + $0xe0] sm:$0xff]
    %v113 = vld [vmem:[#allocation5 + $0xe8] sm:$0xff]
    %v114 = vld [vmem:[#allocation5 + $0xf0] sm:$0xff]
    %v115 = vld [vmem:[#allocation5 + $0xf8] sm:$0xff]
    %v116 = vld [vmem:[#allocation7] sm:$0x3]
    %v118 = vperm.slane %v116, 0
    %v119 = vperm.slane %v116, 1
    %v124 = vunpack.c.l.b16 %v82
    %v125 = vunpack.c.h.b16 %v82
    %v126 = vunpack.c.l.b16 %v83
    %v127 = vunpack.c.h.b16 %v83
    %v128 = vpack.c.b16 %v126, %v124
    %v129 = vpack.c.b16 %v127, %v125
    %v164 = vunpack.c.l.b16 %v84
    %v165 = vunpack.c.h.b16 %v84
    %v166 = vunpack.c.l.b16 %v85
    %v167 = vunpack.c.h.b16 %v85
    %v168 = vunpack.c.l.b16 %v86
    %v169 = vunpack.c.h.b16 %v86
    %v170 = vunpack.c.l.b16 %v87
    %v171 = vunpack.c.h.b16 %v87
    %v172 = vunpack.c.l.b16 %v88
    %v173 = vunpack.c.h.b16 %v88
    %v174 = vunpack.c.l.b16 %v89
    %v175 = vunpack.c.h.b16 %v89
    %v176 = vunpack.c.l.b16 %v90
    %v177 = vunpack.c.h.b16 %v90
    %v178 = vunpack.c.l.b16 %v91
    %v179 = vunpack.c.h.b16 %v91
    %v180 = vunpack.c.l.b16 %v92
    %v181 = vunpack.c.h.b16 %v92
    %v182 = vunpack.c.l.b16 %v93
    %v183 = vunpack.c.h.b16 %v93
    %v184 = vunpack.c.l.b16 %v94
    %v185 = vunpack.c.h.b16 %v94
    %v186 = vunpack.c.l.b16 %v95
    %v187 = vunpack.c.h.b16 %v95
    %v188 = vunpack.c.l.b16 %v96
    %v189 = vunpack.c.h.b16 %v96
    %v190 = vunpack.c.l.b16 %v97
    %v191 = vunpack.c.h.b16 %v97
    %v192 = vunpack.c.l.b16 %v98
    %v193 = vunpack.c.h.b16 %v98
    %v194 = vunpack.c.l.b16 %v99
    %v195 = vunpack.c.h.b16 %v99
    %v196 = vunpack.c.l.b16 %v100
    %v197 = vunpack.c.h.b16 %v100
    %v198 = vunpack.c.l.b16 %v101
    %v199 = vunpack.c.h.b16 %v101
    %v200 = vunpack.c.l.b16 %v102
    %v201 = vunpack.c.h.b16 %v102
    %v202 = vunpack.c.l.b16 %v103
    %v203 = vunpack.c.h.b16 %v103
    %v204 = vunpack.c.l.b16 %v104
    %v205 = vunpack.c.h.b16 %v104
    %v206 = vunpack.c.l.b16 %v105
    %v207 = vunpack.c.h.b16 %v105
    %v208 = vunpack.c.l.b16 %v106
    %v209 = vunpack.c.h.b16 %v106
    %v210 = vunpack.c.l.b16 %v107
    %v211 = vunpack.c.h.b16 %v107
    %v212 = vunpack.c.l.b16 %v108
    %v213 = vunpack.c.h.b16 %v108
    %v214 = vunpack.c.l.b16 %v109
    %v215 = vunpack.c.h.b16 %v109
    %v216 = vunpack.c.l.b16 %v110
    %v217 = vunpack.c.h.b16 %v110
    %v218 = vunpack.c.l.b16 %v111
    %v219 = vunpack.c.h.b16 %v111
    %v220 = vunpack.c.l.b16 %v112
    %v221 = vunpack.c.h.b16 %v112
    %v222 = vunpack.c.l.b16 %v113
    %v223 = vunpack.c.h.b16 %v113
    %v224 = vunpack.c.l.b16 %v114
    %v225 = vunpack.c.h.b16 %v114
    %v226 = vunpack.c.l.b16 %v115
    %v227 = vunpack.c.h.b16 %v115
    %v228 = vpack.c.b16 %v166, %v164
    %v229 = vpack.c.b16 %v167, %v165
    %v230 = vpack.c.b16 %v170, %v168
    %v231 = vpack.c.b16 %v171, %v169
    %v232 = vpack.c.b16 %v174, %v172
    %v233 = vpack.c.b16 %v175, %v173
    %v234 = vpack.c.b16 %v178, %v176
    %v235 = vpack.c.b16 %v179, %v177
    %v236 = vpack.c.b16 %v182, %v180
    %v237 = vpack.c.b16 %v183, %v181
    %v238 = vpack.c.b16 %v186, %v184
    %v239 = vpack.c.b16 %v187, %v185
    %v240 = vpack.c.b16 %v190, %v188
    %v241 = vpack.c.b16 %v191, %v189
    %v242 = vpack.c.b16 %v194, %v192
    %v243 = vpack.c.b16 %v195, %v193
    %v244 = vpack.c.b16 %v198, %v196
    %v245 = vpack.c.b16 %v199, %v197
    %v246 = vpack.c.b16 %v202, %v200
    %v247 = vpack.c.b16 %v203, %v201
    %v248 = vpack.c.b16 %v206, %v204
    %v249 = vpack.c.b16 %v207, %v205
    %v250 = vpack.c.b16 %v210, %v208
    %v251 = vpack.c.b16 %v211, %v209
    %v252 = vpack.c.b16 %v214, %v212
    %v253 = vpack.c.b16 %v215, %v213
    %v254 = vpack.c.b16 %v218, %v216
    %v255 = vpack.c.b16 %v219, %v217
    %v256 = vpack.c.b16 %v222, %v220
    %v257 = vpack.c.b16 %v223, %v221
    %v258 = vpack.c.b16 %v226, %v224
    %v259 = vpack.c.b16 %v227, %v225
    %292 = vmatpush.bf16.msra.mxu0 %v242
    %293 = vmatpush.bf16.msra.mxu0 %v240
    %294 = vmatpush.bf16.msra.mxu0 %v238
    %295 = vmatpush.bf16.msra.mxu0 %v236
    %296 = vmatpush.bf16.msra.mxu0 %v234
    %297 = vmatpush.bf16.msra.mxu0 %v232
    %298 = vmatpush.bf16.msra.mxu0 %v230
    %299 = vmatpush.bf16.msra.mxu0 %v228
    %300 = vmatmul.bf16.gmra.mxu0 %v128
    %v301 = vpop.f32.mrf.mxu0
    %v302 = vadd.f32 %v118, %v301
    %v303 = vpop.f32.mrf.mxu0
    %v304 = vadd.f32 %v118, %v303
    %305 = vdwg.mxu0
    %306 = vmatpush.bf16.msra.mxu0 %v258
    %307 = vmatpush.bf16.msra.mxu0 %v256
    %308 = vmatpush.bf16.msra.mxu0 %v254
    %309 = vmatpush.bf16.msra.mxu0 %v252
    %310 = vmatpush.bf16.msra.mxu0 %v250
    %311 = vmatpush.bf16.msra.mxu0 %v248
    %312 = vmatpush.bf16.msra.mxu0 %v246
    %313 = vmatpush.bf16.msra.mxu0 %v244
    %314 = vmatmul.bf16.gmra.mxu0 %v129
    %v315 = vpop.f32.mrf.mxu0
    %v316 = vadd.f32 %v302, %v315
    %v317 = vpop.f32.mrf.mxu0
    %v318 = vadd.f32 %v304, %v317
    %319 = vdwg.mxu0
    %320 = vmatpush.bf16.msra.mxu0 %v243
    %321 = vmatpush.bf16.msra.mxu0 %v241
    %322 = vmatpush.bf16.msra.mxu0 %v239
    %323 = vmatpush.bf16.msra.mxu0 %v237
    %324 = vmatpush.bf16.msra.mxu0 %v235
    %325 = vmatpush.bf16.msra.mxu0 %v233
    %326 = vmatpush.bf16.msra.mxu0 %v231
    %327 = vmatpush.bf16.msra.mxu0 %v229
    %328 = vmatmul.bf16.gmra.mxu0 %v128
    %v329 = vpop.f32.mrf.mxu0
    %v330 = vadd.f32 %v119, %v329
    %v331 = vpop.f32.mrf.mxu0
    %v332 = vadd.f32 %v119, %v331
    %333 = vdwg.mxu0
    %334 = vmatpush.bf16.msra.mxu0 %v259
    %335 = vmatpush.bf16.msra.mxu0 %v257
    %336 = vmatpush.bf16.msra.mxu0 %v255
    %337 = vmatpush.bf16.msra.mxu0 %v253
    %338 = vmatpush.bf16.msra.mxu0 %v251
    %339 = vmatpush.bf16.msra.mxu0 %v249
    %340 = vmatpush.bf16.msra.mxu0 %v247
    %341 = vmatpush.bf16.msra.mxu0 %v245
    %342 = vmatmul.bf16.gmra.mxu0 %v129
    %v343 = vpop.f32.mrf.mxu0
    %v344 = vadd.f32 %v330, %v343
    %v345 = vpop.f32.mrf.mxu0
    %v346 = vadd.f32 %v332, %v345
    %347 = vdwg.mxu0
    %v348 = vmul.f32 %v316, 0.01
    %v349 = vmul.f32 %v344, 0.01
    %v350 = vmul.f32 %v318, 0.01
    %v351 = vmul.f32 %v346, 0.01
    %v352 = vmax.f32 %v316, %v348
    %v353 = vmax.f32 %v344, %v349
    %v354 = vmax.f32 %v318, %v350
    %v355 = vmax.f32 %v346, %v351
    %v356 = vpack.c.bf16 %v354, %v352
    %v357 = vpack.c.bf16 %v355, %v353
    %v358 = vld [vmem:[#allocation8] sm:$0xff]
    %v359 = vld [vmem:[#allocation8 + $0x8] sm:$0xff]
    %v360 = vld [vmem:[#allocation8 + $0x10] sm:$0xff]
    %v361 = vld [vmem:[#allocation8 + $0x18] sm:$0xff]
    %v362 = vld [vmem:[#allocation8 + $0x20] sm:$0xff]
    %v363 = vld [vmem:[#allocation8 + $0x28] sm:$0xff]
    %v364 = vld [vmem:[#allocation8 + $0x30] sm:$0xff]
    %v365 = vld [vmem:[#allocation8 + $0x38] sm:$0xff]
    %v366 = vld [vmem:[#allocation8 + $0x40] sm:$0xff]
    %v367 = vld [vmem:[#allocation8 + $0x48] sm:$0xff]
    %v368 = vld [vmem:[#allocation8 + $0x50] sm:$0xff]
    %v369 = vld [vmem:[#allocation8 + $0x58] sm:$0xff]
    %v370 = vld [vmem:[#allocation8 + $0x60] sm:$0xff]
    %v371 = vld [vmem:[#allocation8 + $0x68] sm:$0xff]
    %v372 = vld [vmem:[#allocation8 + $0x70] sm:$0xff]
    %v373 = vld [vmem:[#allocation8 + $0x78] sm:$0xff]
    %v374 = vld [vmem:[#allocation8 + $0x80] sm:$0xff]
    %v375 = vld [vmem:[#allocation8 + $0x88] sm:$0xff]
    %v376 = vld [vmem:[#allocation8 + $0x90] sm:$0xff]
    %v377 = vld [vmem:[#allocation8 + $0x98] sm:$0xff]
    %v378 = vld [vmem:[#allocation8 + $0xa0] sm:$0xff]
    %v379 = vld [vmem:[#allocation8 + $0xa8] sm:$0xff]
    %v380 = vld [vmem:[#allocation8 + $0xb0] sm:$0xff]
    %v381 = vld [vmem:[#allocation8 + $0xb8] sm:$0xff]
    %v382 = vld [vmem:[#allocation8 + $0xc0] sm:$0xff]
    %v383 = vld [vmem:[#allocation8 + $0xc8] sm:$0xff]
    %v384 = vld [vmem:[#allocation8 + $0xd0] sm:$0xff]
    %v385 = vld [vmem:[#allocation8 + $0xd8] sm:$0xff]
    %v386 = vld [vmem:[#allocation8 + $0xe0] sm:$0xff]
    %v387 = vld [vmem:[#allocation8 + $0xe8] sm:$0xff]
    %v388 = vld [vmem:[#allocation8 + $0xf0] sm:$0xff]
    %v389 = vld [vmem:[#allocation8 + $0xf8] sm:$0xff]
    %v390 = vld [vmem:[%s4] sm:$0x3]
    %v392 = vperm.slane %v390, 0
    %v393 = vperm.slane %v390, 1
    %v428 = vunpack.c.l.b16 %v358
    %v429 = vunpack.c.h.b16 %v358
    %v430 = vunpack.c.l.b16 %v359
    %v431 = vunpack.c.h.b16 %v359
    %v432 = vunpack.c.l.b16 %v360
    %v433 = vunpack.c.h.b16 %v360
    %v434 = vunpack.c.l.b16 %v361
    %v435 = vunpack.c.h.b16 %v361
    %v436 = vunpack.c.l.b16 %v362
    %v437 = vunpack.c.h.b16 %v362
    %v438 = vunpack.c.l.b16 %v363
    %v439 = vunpack.c.h.b16 %v363
    %v440 = vunpack.c.l.b16 %v364
    %v441 = vunpack.c.h.b16 %v364
    %v442 = vunpack.c.l.b16 %v365
    %v443 = vunpack.c.h.b16 %v365
    %v444 = vunpack.c.l.b16 %v366
    %v445 = vunpack.c.h.b16 %v366
    %v446 = vunpack.c.l.b16 %v367
    %v447 = vunpack.c.h.b16 %v367
    %v448 = vunpack.c.l.b16 %v368
    %v449 = vunpack.c.h.b16 %v368
    %v450 = vunpack.c.l.b16 %v369
    %v451 = vunpack.c.h.b16 %v369
    %v452 = vunpack.c.l.b16 %v370
    %v453 = vunpack.c.h.b16 %v370
    %v454 = vunpack.c.l.b16 %v371
    %v455 = vunpack.c.h.b16 %v371
    %v456 = vunpack.c.l.b16 %v372
    %v457 = vunpack.c.h.b16 %v372
    %v458 = vunpack.c.l.b16 %v373
    %v459 = vunpack.c.h.b16 %v373
    %v460 = vunpack.c.l.b16 %v374
    %v461 = vunpack.c.h.b16 %v374
    %v462 = vunpack.c.l.b16 %v375
    %v463 = vunpack.c.h.b16 %v375
    %v464 = vunpack.c.l.b16 %v376
    %v465 = vunpack.c.h.b16 %v376
    %v466 = vunpack.c.l.b16 %v377
    %v467 = vunpack.c.h.b16 %v377
    %v468 = vunpack.c.l.b16 %v378
    %v469 = vunpack.c.h.b16 %v378
    %v470 = vunpack.c.l.b16 %v379
    %v471 = vunpack.c.h.b16 %v379
    %v472 = vunpack.c.l.b16 %v380
    %v473 = vunpack.c.h.b16 %v380
    %v474 = vunpack.c.l.b16 %v381
    %v475 = vunpack.c.h.b16 %v381
    %v476 = vunpack.c.l.b16 %v382
    %v477 = vunpack.c.h.b16 %v382
    %v478 = vunpack.c.l.b16 %v383
    %v479 = vunpack.c.h.b16 %v383
    %v480 = vunpack.c.l.b16 %v384
    %v481 = vunpack.c.h.b16 %v384
    %v482 = vunpack.c.l.b16 %v385
    %v483 = vunpack.c.h.b16 %v385
    %v484 = vunpack.c.l.b16 %v386
    %v485 = vunpack.c.h.b16 %v386
    %v486 = vunpack.c.l.b16 %v387
    %v487 = vunpack.c.h.b16 %v387
    %v488 = vunpack.c.l.b16 %v388
    %v489 = vunpack.c.h.b16 %v388
    %v490 = vunpack.c.l.b16 %v389
    %v491 = vunpack.c.h.b16 %v389
    %v492 = vpack.c.b16 %v430, %v428
    %v493 = vpack.c.b16 %v431, %v429
    %v494 = vpack.c.b16 %v434, %v432
    %v495 = vpack.c.b16 %v435, %v433
    %v496 = vpack.c.b16 %v438, %v436
    %v497 = vpack.c.b16 %v439, %v437
    %v498 = vpack.c.b16 %v442, %v440
    %v499 = vpack.c.b16 %v443, %v441
    %v500 = vpack.c.b16 %v446, %v444
    %v501 = vpack.c.b16 %v447, %v445
    %v502 = vpack.c.b16 %v450, %v448
    %v503 = vpack.c.b16 %v451, %v449
    %v504 = vpack.c.b16 %v454, %v452
    %v505 = vpack.c.b16 %v455, %v453
    %v506 = vpack.c.b16 %v458, %v456
    %v507 = vpack.c.b16 %v459, %v457
    %v508 = vpack.c.b16 %v462, %v460
    %v509 = vpack.c.b16 %v463, %v461
    %v510 = vpack.c.b16 %v466, %v464
    %v511 = vpack.c.b16 %v467, %v465
    %v512 = vpack.c.b16 %v470, %v468
    %v513 = vpack.c.b16 %v471, %v469
    %v514 = vpack.c.b16 %v474, %v472
    %v515 = vpack.c.b16 %v475, %v473
    %v516 = vpack.c.b16 %v478, %v476
    %v517 = vpack.c.b16 %v479, %v477
    %v518 = vpack.c.b16 %v482, %v480
    %v519 = vpack.c.b16 %v483, %v481
    %v520 = vpack.c.b16 %v486, %v484
    %v521 = vpack.c.b16 %v487, %v485
    %v522 = vpack.c.b16 %v490, %v488
    %v523 = vpack.c.b16 %v491, %v489
    %556 = vmatpush.bf16.msra.mxu0 %v506
    %557 = vmatpush.bf16.msra.mxu0 %v504
    %558 = vmatpush.bf16.msra.mxu0 %v502
    %559 = vmatpush.bf16.msra.mxu0 %v500
    %560 = vmatpush.bf16.msra.mxu0 %v498
    %561 = vmatpush.bf16.msra.mxu0 %v496
    %562 = vmatpush.bf16.msra.mxu0 %v494
    %563 = vmatpush.bf16.msra.mxu0 %v492
    %564 = vmatmul.bf16.gmra.mxu0 %v356
    %v565 = vpop.f32.mrf.mxu0
    %v566 = vadd.f32 %v392, %v565
    %v567 = vpop.f32.mrf.mxu0
    %v568 = vadd.f32 %v392, %v567
    %569 = vdwg.mxu0
    %570 = vmatpush.bf16.msra.mxu0 %v522
    %571 = vmatpush.bf16.msra.mxu0 %v520
    %572 = vmatpush.bf16.msra.mxu0 %v518
    %573 = vmatpush.bf16.msra.mxu0 %v516
    %574 = vmatpush.bf16.msra.mxu0 %v514
    %575 = vmatpush.bf16.msra.mxu0 %v512
    %576 = vmatpush.bf16.msra.mxu0 %v510
    %577 = vmatpush.bf16.msra.mxu0 %v508
    %578 = vmatmul.bf16.gmra.mxu0 %v357
    %v579 = vpop.f32.mrf.mxu0
    %v580 = vadd.f32 %v566, %v579
    %v581 = vpop.f32.mrf.mxu0
    %v582 = vadd.f32 %v568, %v581
    %583 = vdwg.mxu0
    %584 = vmatpush.bf16.msra.mxu0 %v507
    %585 = vmatpush.bf16.msra.mxu0 %v505
    %586 = vmatpush.bf16.msra.mxu0 %v503
    %587 = vmatpush.bf16.msra.mxu0 %v501
    %588 = vmatpush.bf16.msra.mxu0 %v499
    %589 = vmatpush.bf16.msra.mxu0 %v497
    %590 = vmatpush.bf16.msra.mxu0 %v495
    %591 = vmatpush.bf16.msra.mxu0 %v493
    %592 = vmatmul.bf16.gmra.mxu0 %v356
    %v593 = vpop.f32.mrf.mxu0
    %v594 = vadd.f32 %v393, %v593
    %v595 = vpop.f32.mrf.mxu0
    %v596 = vadd.f32 %v393, %v595
    %597 = vdwg.mxu0
    %598 = vmatpush.bf16.msra.mxu0 %v523
    %599 = vmatpush.bf16.msra.mxu0 %v521
    %600 = vmatpush.bf16.msra.mxu0 %v519
    %601 = vmatpush.bf16.msra.mxu0 %v517
    %602 = vmatpush.bf16.msra.mxu0 %v515
    %603 = vmatpush.bf16.msra.mxu0 %v513
    %604 = vmatpush.bf16.msra.mxu0 %v511
    %605 = vmatpush.bf16.msra.mxu0 %v509
    %606 = vmatmul.bf16.gmra.mxu0 %v357
    %v607 = vpop.f32.mrf.mxu0
    %v608 = vadd.f32 %v594, %v607
    %v609 = vpop.f32.mrf.mxu0
    %v610 = vadd.f32 %v596, %v609
    %611 = vdwg.mxu0
    %612 = vst [vmem:[#allocation10] sm:$0xff] %v580
    %613 = vst [vmem:[#allocation10 + $0x8] sm:$0xff] %v608
    %614 = vst [vmem:[#allocation10 + $0x10] sm:$0xff] %v582
    %615 = vst [vmem:[#allocation10 + $0x18] sm:$0xff] %v610
    // Predicated region
    $region38: #{tpu_custom_call.1} parent=1 // pred_check
      _
    $region39: #{tpu_custom_call.1} parent=1 // pred_check_branch
      %617 = sbr.rel (0) target = $region41
    $region40: #{tpu_custom_call.1} parent=1 // pred_region
      %619 = vsyncadd [#allocation4], 0
      %s620 = sshll.u32 [#allocation10], 4
      %s621 = int_to_ptr.vmem [resolvable:$true] %s620
      %s622 = sshll.u32 %s5, 4
      %s623 = int_to_ptr.hbm [resolvable:$true] %s622
      %628 = dma.vmem_to_hbm [thread:$0]  %s621, 512, %s623, [#allocation4], 256, 256, 16
    $region41: #{tpu_custom_call.1} parent=1 // pred_fallthru
      _
    // Predicated region
    $region42: #{tpu_custom_call.1} parent=1 // pred_check
      _
    $region43: #{tpu_custom_call.1} parent=1 // pred_check_branch
      %630 = sbr.rel (0) target = $region45
    $region44: #{tpu_custom_call.1} parent=1 // pred_region
      %632 = dma.done [#allocation4], 512
    $region45: #{tpu_custom_call.1} parent=1 // pred_fallthru
      _
    %633 = vsyncpa [#allocation3], 1
    %634 = vsyncpa [#allocation6], 1
    %635 = vsyncpa [#allocation9], 1
    %636 = vsyncpa [#allocation4], 1

</llo_original>
